<compile_context>
chip_gen: v5e
topology: v5e:2x2
jax: 0.10.0
libtpu: 0.0.40
codegen_flags: <defaults>
</compile_context>

<pallas_src>
import math

import numpy as np
import jax
import jax.numpy as jnp
from jax.experimental import pallas as pl
from jax.experimental.pallas import tpu as pltpu

_SUBLANES = 8
_MAX_SEQS_PER_TILE = 32      # caps the statically-unrolled per-sequence PE add
_MAX_TILE_ROWS = 4096        # per-step overhead amortization plateaus past this


def _round_up(x, m):
    return (x + m - 1) // m * m


def _vmem_capacity_bytes():
    """Physical per-core VMEM (v5e/v6e: 128 MiB, v7x: 64 MiB/TC).
    Conservative 64 MiB fallback if the query is unavailable."""
    try:
        cap = getattr(pltpu.get_tpu_info(), "vmem_capacity_bytes", None)
        if cap:
            return int(cap)
    except Exception:
        pass
    return 64 * 2**20


# ----------------------------------------------------------------------------
# Kernel body factory: one M-row tile ->  out = cast(x) @ W + (PE + bias)
# ----------------------------------------------------------------------------
def _make_kernel(tm, seq_len, seqs_per_tile, n_pe_blocks, compute_dtype):
    """tm rows per tile; PE table (seq_len, E) is resident in VMEM.

    seqs_per_tile is None  -> tile lies inside one sequence (tm | seq_len);
                               PE rows are sliced out of the resident table.
    seqs_per_tile = k      -> tile holds k whole sequences; PE is added to each
                               seq_len-row sub-block (small, statically unrolled).
    """
    def kernel(x_ref, w_ref, pe_ref, o_ref):
        # In-kernel cast of x to the compute dtype (free VPU filler when the
        # kernel is mem-bound; no standalone XLA cast pass in the wrapper).
        x = x_ref[...].astype(compute_dtype)
        y = jnp.dot(x, w_ref[...], preferred_element_type=jnp.float32)

        if seqs_per_tile is None:
            if n_pe_blocks == 1:
                pe = pe_ref[...]
            else:
                off = pl.multiple_of(
                    (pl.program_id(0) % n_pe_blocks) * tm, _SUBLANES)
                pe = pe_ref[pl.ds(off, tm), :]
            o_ref[...] = (y + pe.astype(jnp.float32)).astype(o_ref.dtype)
        else:
            pe = pe_ref[...].astype(jnp.float32)
            for s in range(seqs_per_tile):        # bounded by _MAX_SEQS_PER_TILE
                blk = y[s * seq_len:(s + 1) * seq_len, :] + pe
                o_ref[pl.ds(s * seq_len, seq_len), :] = blk.astype(o_ref.dtype)
    return kernel


# ----------------------------------------------------------------------------
# One-time (init-time) parameter preparation.
# ----------------------------------------------------------------------------
def prepare_params(weight, bias, pe, compute_dtype=jnp.bfloat16,
                   pe_dtype=jnp.float32):
    """Pre-transpose the Linear weight and fold the bias into the PE table.

    Args:
        weight: (E, D_in)  nn.Linear layout.
        bias:   (E,)
        pe:     (T_max, E) sinusoidal positional encoding.
    Returns:
        w_t : (D_in, E) in compute_dtype.
        pe_b: (T_max, E) in pe_dtype, = PE + bias.
    """
    E, D_in = weight.shape
    assert bias.shape == (E,)
    assert pe.ndim == 2 and pe.shape[1] == E
    w_t = weight.T.astype(compute_dtype)
    pe_b = (pe.astype(jnp.float32) + bias.astype(jnp.float32)[None, :]).astype(pe_dtype)
    return w_t, pe_b


# ----------------------------------------------------------------------------
# Tile selection: largest M-row tile that never straddles a sequence boundary,
# preferring >= 8 grid steps (pipelining + both v7x TCs), then >= 2, then 1.
# ----------------------------------------------------------------------------
def _select_tile(batch, seq_len, row_budget):
    total = batch * seq_len

    def best_for_cap(cap):
        cap = min(cap, row_budget)
        if cap < _SUBLANES:
            return None
        # (a) largest divisor of seq_len that is a multiple of 8 and <= cap
        d_a = 0
        d = (min(seq_len, cap) // _SUBLANES) * _SUBLANES
        while d >= _SUBLANES:
            if seq_len % d == 0:
                d_a = d
                break
            d -= _SUBLANES
        # (b) largest k | batch with k*seq_len <= cap (bounded unroll)
        k_b = 0
        k = min(batch, cap // seq_len, _MAX_SEQS_PER_TILE)
        while k >= 1:
            if batch % k == 0:
                k_b = k
                break
            k -= 1
        if d_a == 0 and k_b == 0:
            return None
        if d_a >= k_b * seq_len:
            return d_a, None
        return k_b * seq_len, k_b

    for min_steps in (8, 2, 1):
        cap = total // min_steps
        if cap < _SUBLANES:
            continue
        choice = best_for_cap(cap)
        if choice is not None:
            return choice
    return _SUBLANES, None      # unreachable when seq_len % 8 == 0


# ----------------------------------------------------------------------------
# Per-call wrapper.
# ----------------------------------------------------------------------------
def general_input_processor(x, w_t, pe_b, embed_dim, *,
                            out_dtype=jnp.float32, x_buffers=None):
    """Forward pass of GeneralInputProcessor (use_mlp=False, use_positional=True).

    Args:
        x        : (B, T, D_in), any float dtype (cast in-kernel to w_t.dtype).
        w_t      : (D_in, E)  from prepare_params.
        pe_b     : (T_max, E) from prepare_params (T_max >= T).
        embed_dim: E.
        out_dtype: stored output dtype (bf16 halves the dominant HBM write).
        x_buffers: optional pipeline depth (>2) for the x stream (v7x, exposed DMA).
    Returns:
        (B, T, E) array of out_dtype.
    """
    assert x.ndim == 3, f"Expected (B, T, D), got {x.shape}"
    B, T, D_in = x.shape
    D_in_w, E = w_t.shape
    assert D_in_w == D_in, (D_in_w, D_in)
    assert E == embed_dim, (E, embed_dim)
    assert pe_b.shape[0] >= T, "PE table shorter than sequence length"
    assert pe_b.shape[1] == E

    compute_dtype = w_t.dtype

    # ---- fallback for awkward T: pad to a sublane multiple (rows discarded) ----
    T_eff = _round_up(T, _SUBLANES)
    if T_eff != T:
        x = jnp.pad(x, ((0, 0), (0, T_eff - T), (0, 0)))
    if pe_b.shape[0] >= T_eff:
        pe_seq = pe_b if pe_b.shape[0] == T_eff else pe_b[:T_eff]
    else:
        pe_seq = jnp.pad(pe_b[:T], ((0, T_eff - T), (0, 0)))

    M = B * T_eff
    xf = x.reshape(M, D_in)              # free reshape; native dtype untouched

    # ---- VMEM budget & tile selection ----
    x_isz = np.dtype(xf.dtype).itemsize
    w_isz = np.dtype(w_t.dtype).itemsize
    pe_isz = np.dtype(pe_seq.dtype).itemsize
    o_isz = np.dtype(out_dtype).itemsize

    vmem_cap = _vmem_capacity_bytes()
    resident = D_in * E * w_isz + T_eff * E * pe_isz     # weight + PE (constant blocks)
    per_row = 2 * (D_in * x_isz + E * o_isz)             # double-buffered x + out
    budget = int(0.75 * vmem_cap)
    row_budget = max(_SUBLANES, (budget - 2 * resident) // per_row)
    row_budget = min(row_budget, _MAX_TILE_ROWS)
    row_budget = (row_budget // _SUBLANES) * _SUBLANES

    tm, seqs_per_tile = _select_tile(B, T_eff, row_budget)
    grid = (M // tm,)
    n_pe_blocks = (T_eff // tm) if seqs_per_tile is None else 1

    # ---- VMEM limit: 2x streamed tiles + 2x resident params, clamped below
    #      physical VMEM (64 MiB/TC on v7x) ----
    need = 2 * tm * (D_in * x_isz + E * o_isz) + 2 * resident
    vmem_limit = int(min(0.9 * vmem_cap, max(32 * 2**20, 2 * need)))
    vmem_limit = int(min(max(vmem_limit, need + (1 << 20)), vmem_cap))

    cost = pl.CostEstimate(
        flops=2 * M * D_in * E,
        transcendentals=0,
        bytes_accessed=(M * D_in * x_isz        # x read (native dtype)
                        + D_in * E * w_isz      # weight read once (resident)
                        + T_eff * E * pe_isz    # PE read once (resident)
                        + M * E * o_isz),       # output write in store dtype
    )

    x_spec_kwargs = {}
    if x_buffers is not None and int(x_buffers) > 2:
        x_spec_kwargs["pipeline_mode"] = pl.Buffered(int(x_buffers))

    grid_spec = pltpu.PrefetchScalarGridSpec(
        num_scalar_prefetch=0,
        grid=grid,
        in_specs=[
            pl.BlockSpec((tm, D_in), lambda i: (i, 0), **x_spec_kwargs),  # streamed x
            pl.BlockSpec((D_in, E), lambda i: (0, 0)),                    # resident W
            pl.BlockSpec((T_eff, E), lambda i: (0, 0)),                   # resident PE+b
        ],
        out_specs=pl.BlockSpec((tm, E), lambda i: (i, 0)),
    )

    kernel = _make_kernel(tm=tm, seq_len=T_eff, seqs_per_tile=seqs_per_tile,
                          n_pe_blocks=n_pe_blocks, compute_dtype=compute_dtype)

    out_flat = pl.pallas_call(
        kernel,
        out_shape=jax.ShapeDtypeStruct((M, E), out_dtype),
        grid_spec=grid_spec,
        compiler_params=pltpu.CompilerParams(
            dimension_semantics=("parallel",),
            vmem_limit_bytes=vmem_limit,
        ),
        cost_estimate=cost,
    )(xf, w_t, pe_seq)

    out = out_flat.reshape(B, T_eff, E)
    if T_eff != T:
        out = out[:, :T, :]
    return out


def make_sinusoidal_pe(seq_len, embed_dim, dtype=jnp.float32):
    """Standard transformer sinusoidal positional encoding, shape (seq_len, embed_dim)."""
    position = jnp.arange(seq_len, dtype=jnp.float32)[:, None]
    div_term = jnp.exp(jnp.arange(0, embed_dim, 2, dtype=jnp.float32)
                       * (-math.log(10000.0) / embed_dim))
    pe = jnp.zeros((seq_len, embed_dim), dtype=jnp.float32)
    pe = pe.at[:, 0::2].set(jnp.sin(position * div_term))
    pe = pe.at[:, 1::2].set(jnp.cos(position * div_term))
    return pe.astype(dtype)


if __name__ == "__main__":
    E = 32

    def make_case(key, B, T, D_in):
        kx, kw, kb = jax.random.split(key, 3)
        x = jax.random.normal(kx, (B, T, D_in), dtype=jnp.float32)
        bound = 1.0 / math.sqrt(D_in)
        weight = jax.random.uniform(kw, (E, D_in), minval=-bound, maxval=bound,
                                    dtype=jnp.float32)
        bias = jax.random.uniform(kb, (E,), minval=-bound, maxval=bound,
                                  dtype=jnp.float32)
        pe = make_sinusoidal_pe(T, E)
        ref = (jnp.einsum("btd,ed->bte", x, weight,
                          precision=jax.lax.Precision.HIGHEST)
               + bias[None, None, :] + pe[None, :, :])
        return x, weight, bias, pe, ref

    keys = jax.random.split(jax.random.PRNGKey(0), 4)

    # (B, T, D_in):
    #   baseline tiny / many short sequences (multi-sequence tiles) /
    #   long sequence (in-kernel PE slicing, tm < T) / T not a multiple of 8 (pad path)
    cases = [(2, 8, 16), (32, 8, 16), (2, 64, 16), (2, 10, 16)]

    for key, (B, T, D_in) in zip(keys, cases):
        x, weight, bias, pe, ref = make_case(key, B, T, D_in)
        w_t, pe_b = prepare_params(weight, bias, pe, compute_dtype=jnp.float32)
        out = general_input_processor(x, w_t, pe_b, E)
        out = jax.block_until_ready(out)
        assert out.shape == (B, T, E), (out.shape, (B, T, E))
        assert jnp.allclose(out, ref, atol=1e-4, rtol=1e-4), ("f32 mismatch", B, T, D_in)

    # bf16 compute + bf16 output path (halves dominant HBM read + write traffic);
    # x stays f32 at the boundary and is cast on the VPU inside the kernel.
    B, T, D_in = 32, 8, 16
    x, weight, bias, pe, ref = make_case(keys[1], B, T, D_in)
    w_t16, pe_b16 = prepare_params(weight, bias, pe, compute_dtype=jnp.bfloat16)
    out16 = general_input_processor(x, w_t16, pe_b16, E, out_dtype=jnp.bfloat16)
    out16 = jax.block_until_ready(out16)
    assert out16.shape == (B, T, E)
    assert jnp.allclose(out16.astype(jnp.float32), ref, atol=5e-2, rtol=5e-2), "bf16 mismatch"

    print("KERNEL_OK")
</pallas_src>

<mosaic_0001>
module attributes {stable_mosaic.version = 11 : i64} {
  func.func @kernel(%arg0: i32, %arg1: memref<8x16xf32, #tpu.memory_space<vmem>>, %arg2: memref<16x32xf32, #tpu.memory_space<vmem>>, %arg3: memref<8x32xf32, #tpu.memory_space<vmem>>, %arg4: memref<8x32xf32, #tpu.memory_space<vmem>>) attributes {dimension_semantics = [#tpu.dimension_semantics<parallel>], iteration_bounds = array<i64: 2>, scalar_prefetch = 0 : i64, scratch_operands = 0 : i64, tpu.core_type = #tpu.core_type<tc>, window_params = [{transform_indices = @transform_0, window_bounds = array<i64: 8, 16>}, {pipeline_mode = #tpu.pipeline_mode<synchronous>, transform_indices = @transform_1, window_bounds = array<i64: 16, 32>}, {pipeline_mode = #tpu.pipeline_mode<synchronous>, transform_indices = @transform_2, window_bounds = array<i64: 8, 32>}, {transform_indices = @transform_3, window_bounds = array<i64: 8, 32>}]} {
    %c0 = arith.constant 0 : index
    %c0_0 = arith.constant 0 : index
    %0 = vector.load %arg1[%c0, %c0_0] : memref<8x16xf32, #tpu.memory_space<vmem>>, vector<8x16xf32>
    %c0_1 = arith.constant 0 : index
    %c0_2 = arith.constant 0 : index
    %1 = vector.load %arg2[%c0_1, %c0_2] : memref<16x32xf32, #tpu.memory_space<vmem>>, vector<16x32xf32>
    %cst = arith.constant dense<0.000000e+00> : vector<8x32xf32>
    %2 = tpu.matmul %0, %1, %cst {dimension_numbers = #tpu.dot_dimension_numbers<[1], [0], [0], [1], [0, 0, 1, 1], [], []>} : vector<8x16xf32>, vector<16x32xf32>, vector<8x32xf32> -> vector<8x32xf32>
    %c0_3 = arith.constant 0 : index
    %c0_4 = arith.constant 0 : index
    %3 = vector.load %arg3[%c0_3, %c0_4] : memref<8x32xf32, #tpu.memory_space<vmem>>, vector<8x32xf32>
    %4 = arith.addf %2, %3 : vector<8x32xf32>
    %c0_5 = arith.constant 0 : index
    %c0_6 = arith.constant 0 : index
    %5 = vector.load %arg4[%c0_5, %c0_6] : memref<8x32xf32, #tpu.memory_space<vmem>>, vector<8x32xf32>
    tpu.vector_store %arg4[%c0_5, %c0_6], %4 {strides = array<i32>} : memref<8x32xf32, #tpu.memory_space<vmem>>, vector<8x32xf32>,
    return
  }
  func.func @transform_0(%arg0: i32) -> (i32, i32) {
    %c0_i32 = arith.constant 0 : i32
    %c0_i32_0 = arith.constant 0 : i32
    return %arg0, %c0_i32 : i32, i32
  }
  func.func @transform_1(%arg0: i32) -> (i32, i32) {
    %c0_i32 = arith.constant 0 : i32
    %c0_i32_0 = arith.constant 0 : i32
    %c0_i32_1 = arith.constant 0 : i32
    return %c0_i32, %c0_i32_0 : i32, i32
  }
  func.func @transform_2(%arg0: i32) -> (i32, i32) {
    %c0_i32 = arith.constant 0 : i32
    %c0_i32_0 = arith.constant 0 : i32
    %c0_i32_1 = arith.constant 0 : i32
    return %c0_i32, %c0_i32_0 : i32, i32
  }
  func.func @transform_3(%arg0: i32) -> (i32, i32) {
    %c0_i32 = arith.constant 0 : i32
    %c0_i32_0 = arith.constant 0 : i32
    return %arg0, %c0_i32 : i32, i32
  }
}

</mosaic_0001>

<llo_original>
// kernel: tpu_custom_call.1
$region0: #{tpu_custom_call.1}
  #allocation0 [shape = 'u32[]', space=smem, size = 0x4, offset = 0x4, fixed_abs, tag = 'smem constant byte address 0x4 - core index']
  #allocation1 [shape = 'u32[72,128]{1,0:T(1,128)}', space=vmem, size = 0x9000, scoped, tag = 'internal scratch']
  %s0 = inlined_call_operand.hbm [shape: f32[16,16], index: 0, kind: input, shape index: {}]
  %s1 = inlined_call_operand.hbm [shape: f32[16,32], index: 1, kind: input, shape index: {}]
  %s2 = inlined_call_operand.hbm [shape: f32[8,32], index: 2, kind: input, shape index: {}]
  %s3 = inlined_call_operand.hbm [shape: f32[16,32], index: 3, kind: output, shape index: {}]
  %s4 = sld [smem:[#allocation0]]
  $region57: #{tpu_custom_call.1} parent=0
    _
  %s6 = ssub.s32 1, %s4
  %s7 = scalar_select 0, %s6, %s4
  $region1: #{tpu_custom_call.1} parent=0
    #allocation2 [shape = 'u8[8192]{0}', space=vmem, size = 0x2000, scoped, tag = 'input window, operand 0']
    #allocation3 [shape = 's32[2]{0}', space=sflag, size = 0x8, scoped, tag = 'scoped memory for tpu_custom_call.1']
    #allocation4 [shape = 's32[2]{0}', space=sflag, size = 0x8, scoped, tag = 'scoped memory for tpu_custom_call.1']
    #allocation5 [shape = 'u8[8192]{0}', space=vmem, size = 0x2000, scoped, tag = 'input window, operand 1, single buffered']
    #allocation6 [shape = 's32[1]{0}', space=sflag, size = 0x4, scoped, tag = 'scoped memory for tpu_custom_call.1']
    #allocation7 [shape = 'u8[4096]{0}', space=vmem, size = 0x1000, scoped, tag = 'input window, operand 2, single buffered']
    #allocation8 [shape = 'u8[8192]{0}', space=vmem, size = 0x2000, scoped, tag = 'output window, operand 0']
    %8 = vsyncpa [#allocation3], 0
    %s9 = scalar_lea.sflag [#allocation3], 1
    %10 = vsyncpa %s9, 0
    %11 = vsyncpa [#allocation6], 0
    %12 = vsyncpa [#allocation4], 0
    %s13 = scalar_lea.sflag [#allocation4], 1
    %14 = vsyncpa %s13, 0
    loop: start=0, step=1, limit=4
    $region2: #{tpu_custom_call.1} parent=1 // loop_pre_header
      _
    $region3: #{tpu_custom_call.1} parent=1 // loop_header
      %s16 = sphi 0, %s20
      %p17 = scmp.ge.s32.totalorder %s16, 4
      %s26 = sphi 0, %s28
      %s29 = sphi 0, %s26
      %s30 = sphi 0, %s29
      %s46 = sphi 0, %s30
      %s50 = sphi 0, %s50
      %s52 = sphi 0, %s50
      %s53 = sphi 0, %s52
      %s67 = sphi 0, %s53
      %s71 = sphi 0, %s71
      %s73 = sphi 0, %s71
      %s74 = sphi 0, %s73
      %s88 = sphi 0, %s74
      %s94 = sphi 0, %s96
      %s97 = sphi 0, %s94
      %s98 = sphi 0, %s97
      %s114 = sphi 0, %s98
    $region4: #{tpu_custom_call.1} parent=1 // loop_header_branch
      %19 = sbr.rel (%p17) target = $region8
    $region5: #{tpu_custom_call.1} parent=1 // loop_body
      %s21 = ssub.s32 %s16, 1
      %s22 = ssub.s32 %s16, 2
      %s23 = sadd.s32 %s16, 1
      %s24 = ssub.s32 %s16, %s23
      %p25 = scmp.eq.s32.totalorder %s24, 0
      %s27 = sadd.s32 %s26, 1
      %s28 = scalar_select %p25, %s26, %s27
      %p31 = pneg %p25
      %p32 = scmp.eq.s32.totalorder %s16, 1
      %p33 = por %p31, %p32
      %p34 = scmp.ne.s32.totalorder %s26, %s29
      %p35 = scmp.eq.s32.totalorder %s16, 0
      %p36 = por %p34, %p35
      %p37 = scmp.ne.s32.totalorder %s26, %s29
      %p38 = scmp.eq.s32.totalorder %s21, 1
      %p39 = por %p37, %p38
      %p40 = scmp.ne.s32.totalorder %s29, %s30
      %p41 = scmp.eq.s32.totalorder %s21, 0
      %p42 = por %p40, %p41
      %p43 = scmp.ne.s32.totalorder %s29, %s30
      %p44 = scmp.eq.s32.totalorder %s22, 1
      %p45 = por %p43, %p44
      %p47 = scmp.ne.s32.totalorder %s30, %s46
      %p48 = scmp.eq.s32.totalorder %s22, 0
      %p49 = por %p47, %p48
      %s51 = sadd.s32 %s50, 1
      %p54 = scmp.eq.s32.totalorder %s16, 1
      %p55 = scmp.ne.s32.totalorder %s50, %s52
      %p56 = scmp.eq.s32.totalorder %s16, 0
      %p57 = por %p55, %p56
      %p58 = scmp.ne.s32.totalorder %s50, %s52
      %p59 = scmp.eq.s32.totalorder %s21, 1
      %p60 = por %p58, %p59
      %p61 = scmp.ne.s32.totalorder %s52, %s53
      %p62 = scmp.eq.s32.totalorder %s21, 0
      %p63 = por %p61, %p62
      %p64 = scmp.ne.s32.totalorder %s52, %s53
      %p65 = scmp.eq.s32.totalorder %s22, 1
      %p66 = por %p64, %p65
      %p68 = scmp.ne.s32.totalorder %s53, %s67
      %p69 = scmp.eq.s32.totalorder %s22, 0
      %p70 = por %p68, %p69
      %s72 = sadd.s32 %s71, 1
      %p75 = scmp.eq.s32.totalorder %s16, 1
      %p76 = scmp.ne.s32.totalorder %s71, %s73
      %p77 = scmp.eq.s32.totalorder %s16, 0
      %p78 = por %p76, %p77
      %p79 = scmp.ne.s32.totalorder %s71, %s73
      %p80 = scmp.eq.s32.totalorder %s21, 1
      %p81 = por %p79, %p80
      %p82 = scmp.ne.s32.totalorder %s73, %s74
      %p83 = scmp.eq.s32.totalorder %s21, 0
      %p84 = por %p82, %p83
      %p85 = scmp.ne.s32.totalorder %s73, %s74
      %p86 = scmp.eq.s32.totalorder %s22, 1
      %p87 = por %p85, %p86
      %p89 = scmp.ne.s32.totalorder %s74, %s88
      %p90 = scmp.eq.s32.totalorder %s22, 0
      %p91 = por %p89, %p90
      %s92 = ssub.s32 %s16, %s23
      %p93 = scmp.eq.s32.totalorder %s92, 0
      %s95 = sadd.s32 %s94, 1
      %s96 = scalar_select %p93, %s94, %s95
      %p99 = pneg %p93
      %p100 = scmp.eq.s32.totalorder %s16, 1
      %p101 = por %p99, %p100
      %p102 = scmp.ne.s32.totalorder %s94, %s97
      %p103 = scmp.eq.s32.totalorder %s16, 0
      %p104 = por %p102, %p103
      %p105 = scmp.ne.s32.totalorder %s94, %s97
      %p106 = scmp.eq.s32.totalorder %s21, 1
      %p107 = por %p105, %p106
      %p108 = scmp.ne.s32.totalorder %s97, %s98
      %p109 = scmp.eq.s32.totalorder %s21, 0
      %p110 = por %p108, %p109
      %p111 = scmp.ne.s32.totalorder %s97, %s98
      %p112 = scmp.eq.s32.totalorder %s22, 1
      %p113 = por %p111, %p112
      %p115 = scmp.ne.s32.totalorder %s98, %s114
      %p116 = scmp.eq.s32.totalorder %s22, 0
      %p117 = por %p115, %p116
      %p118 = scmp.le.s32.totalorder 1, %s16
      %p119 = scmp.lt.s32.totalorder %s16, 3
      %p120 = pnand %p118, %p119
      %p121 = pneg %p120
      // Predicated region
      $region9: #{tpu_custom_call.1} parent=5 // pred_check
        _
      $region10: #{tpu_custom_call.1} parent=5 // pred_check_branch
        %123 = sbr.rel (%p120) target = $region12
      $region11: #{tpu_custom_call.1} parent=5 // pred_region
        %s124 = ssub.s32 %s16, 1
        // Predicated region
        $region13: #{tpu_custom_call.1} parent=11 // pred_check
          %p125 = pneg %p63
        $region14: #{tpu_custom_call.1} parent=11 // pred_check_branch
          %127 = sbr.rel (%p125) target = $region16
        $region15: #{tpu_custom_call.1} parent=11 // pred_region
          %129 = vsyncadd [#allocation6], 0
          %s130 = sshll.u32 %s1, 4
          %s131 = int_to_ptr.hbm [resolvable:$true] %s130
          %s132 = sshll.u32 [#allocation5], 4
          %s133 = int_to_ptr.vmem [resolvable:$true] %s132
          %138 = dma.hbm_to_vmem [thread:$0]  %s131, 256, %s133, [#allocation6], 128, 128, 8
        $region16: #{tpu_custom_call.1} parent=11 // pred_fallthru
          _
        // Predicated region
        $region17: #{tpu_custom_call.1} parent=11 // pred_check
          %p139 = pneg %p84
        $region18: #{tpu_custom_call.1} parent=11 // pred_check_branch
          %141 = sbr.rel (%p139) target = $region20
        $region19: #{tpu_custom_call.1} parent=11 // pred_region
          %143 = vsyncadd [#allocation6], 0
          %s145 = sshll.u32 %s2, 4
          %s146 = int_to_ptr.hbm [resolvable:$true] %s145
          %s147 = sshll.u32 [#allocation7], 4
          %s148 = int_to_ptr.vmem [resolvable:$true] %s147
          %150 = dma.hbm_to_vmem [thread:$0]  %s146, 128, %s148, [#allocation6]
        $region20: #{tpu_custom_call.1} parent=11 // pred_fallthru
          _
      $region12: #{tpu_custom_call.1} parent=5 // pred_fallthru
        _
      %p151 = scmp.lt.s32.totalorder %s16, 2
      // Predicated region
      $region21: #{tpu_custom_call.1} parent=5 // pred_check
        %p152 = pneg %p151
      $region22: #{tpu_custom_call.1} parent=5 // pred_check_branch
        %154 = sbr.rel (%p152) target = $region24
      $region23: #{tpu_custom_call.1} parent=5 // pred_region
        // Predicated region
        $region25: #{tpu_custom_call.1} parent=23 // pred_check
          %p155 = pneg %p36
        $region26: #{tpu_custom_call.1} parent=23 // pred_check_branch
          %157 = sbr.rel (%p155) target = $region28
        $region27: #{tpu_custom_call.1} parent=23 // pred_region
          %s158 = sand.u32 %s26, 1
          %s159 = scalar_lea.sflag [#allocation3], %s158
          %s160 = sand.u32 %s26, 1
          %s161 = smul.addr %s160, 8
          %s162 = scalar_lea.vmem [#allocation2], %s161
          %164 = vsyncadd %s159, 0
          %s165 = smul.addr %s16, 8
          %s166 = scalar_lea.hbm %s0, %s165
          %s168 = sshll.u32 %s166, 4
          %s169 = int_to_ptr.hbm [resolvable:$true] %s168
          %s170 = sshll.u32 %s162, 4
          %s171 = int_to_ptr.vmem [resolvable:$true] %s170
          %173 = dma.hbm_to_vmem [thread:$0]  %s169, 128, %s171, %s159
        $region28: #{tpu_custom_call.1} parent=23 // pred_fallthru
          _
      $region24: #{tpu_custom_call.1} parent=5 // pred_fallthru
        _
      %p174 = scmp.le.s32.totalorder 1, %s16
      %p175 = scmp.lt.s32.totalorder %s16, 3
      %p176 = pnand %p174, %p175
      %p177 = pneg %p176
      // Predicated region
      $region29: #{tpu_custom_call.1} parent=5 // pred_check
        _
      $region30: #{tpu_custom_call.1} parent=5 // pred_check_branch
        %179 = sbr.rel (%p176) target = $region32
      $region31: #{tpu_custom_call.1} parent=5 // pred_region
        %s180 = ssub.s32 %s16, 1
        %s181 = sand.u32 %s29, 1
        %s182 = scalar_lea.sflag [#allocation3], %s181
        %s183 = sand.u32 %s29, 1
        %s184 = smul.addr %s183, 8
        %s185 = scalar_lea.vmem [#allocation2], %s184
        // Predicated region
        $region33: #{tpu_custom_call.1} parent=31 // pred_check
          %p186 = pneg %p42
        $region34: #{tpu_custom_call.1} parent=31 // pred_check_branch
          %188 = sbr.rel (%p186) target = $region36
        $region35: #{tpu_custom_call.1} parent=31 // pred_region
          %190 = dma.done %s182, 128
        $region36: #{tpu_custom_call.1} parent=31 // pred_fallthru
          _
        // Predicated region
        $region37: #{tpu_custom_call.1} parent=31 // pred_check
          %p191 = pneg %p63
        $region38: #{tpu_custom_call.1} parent=31 // pred_check_branch
          %193 = sbr.rel (%p191) target = $region40
        $region39: #{tpu_custom_call.1} parent=31 // pred_region
          %195 = dma.done [#allocation6], 256
        $region40: #{tpu_custom_call.1} parent=31 // pred_fallthru
          _
        // Predicated region
        $region41: #{tpu_custom_call.1} parent=31 // pred_check
          %p196 = pneg %p84
        $region42: #{tpu_custom_call.1} parent=31 // pred_check_branch
          %198 = sbr.rel (%p196) target = $region44
        $region43: #{tpu_custom_call.1} parent=31 // pred_region
          %200 = dma.done [#allocation6], 128
        $region44: #{tpu_custom_call.1} parent=31 // pred_fallthru
          _
        %s201 = sand.u32 %s29, 1
        %s202 = scalar_lea.sflag [#allocation3], %s201
        %s203 = sand.u32 %s29, 1
        %s204 = smul.addr %s203, 8
        %s205 = scalar_lea.vmem [#allocation2], %s204
        %p206 = pneg %p42
        %p207 = pneg %p39
        %p208 = pneg %p63
        %p209 = pneg %p60
        %p210 = pneg %p84
        %p211 = pneg %p81
        %p212 = pneg %p110
        %p213 = pneg %p107
        %s214 = sand.u32 %s97, 1
        %s215 = scalar_lea.sflag [#allocation4], %s214
        %s216 = sand.u32 %s97, 1
        %s217 = smul.addr %s216, 8
        %s218 = scalar_lea.vmem [#allocation8], %s217
        %v219 = vld [vmem:[%s185] sm:$0xff]
        %v220 = vld [vmem:[#allocation5] sm:$0xff]
        %v221 = vld [vmem:[#allocation5 + $0x8] sm:$0xff]
        %v222 = vld [vmem:[#allocation7] sm:$0xff]
        %vm223 = vcmask 130048
        %v225 = vsel %vm223, %v219, 0
        %227 = vmatpush.msra.mxu0 0.0
        %228 = vmatpush.msra.mxu0 0.0
        %229 = vmatpush.msra.mxu0 0.0
        %230 = vmatpush.msra.mxu0 0.0
        %231 = vmatpush.msra.mxu0 0.0
        %232 = vmatpush.msra.mxu0 0.0
        %233 = vmatpush.msra.mxu0 0.0
        %234 = vmatpush.msra.mxu0 0.0
        %235 = vmatpush.msra.mxu0 0.0
        %236 = vmatpush.msra.mxu0 0.0
        %237 = vmatpush.msra.mxu0 0.0
        %238 = vmatpush.msra.mxu0 0.0
        %239 = vmatpush.msra.mxu0 0.0
        %240 = vmatpush.msra.mxu0 0.0
        %241 = vmatpush.msra.mxu0 %v221
        %242 = vmatpush.msra.mxu0 %v220
        %243 = vmatmul.f32.gmra.mxu0 %v225
        %v244 = vpop.f32.mrf.mxu0
        %v245 = vadd.f32 %v222, %v244
        %246 = vdwg.mxu0
        %vm247 = vcmask 261120
        %248 = vst.msk [vmem:[%s218] sm:$0xff] %vm247, %v245
        %s249 = sand.u32 %s97, 1
        %s250 = scalar_lea.sflag [#allocation4], %s249
        %s251 = sand.u32 %s97, 1
        %s252 = smul.addr %s251, 8
        %s253 = scalar_lea.vmem [#allocation8], %s252
        // Predicated region
        $region45: #{tpu_custom_call.1} parent=31 // pred_check
          %p254 = pneg %p107
        $region46: #{tpu_custom_call.1} parent=31 // pred_check_branch
          %256 = sbr.rel (%p254) target = $region48
        $region47: #{tpu_custom_call.1} parent=31 // pred_region
          %258 = vsyncadd %s250, 0
          %s259 = smul.addr %s21, 8
          %s260 = scalar_lea.hbm %s3, %s259
          %s262 = sshll.u32 %s253, 4
          %s263 = int_to_ptr.vmem [resolvable:$true] %s262
          %s264 = sshll.u32 %s260, 4
          %s265 = int_to_ptr.hbm [resolvable:$true] %s264
          %267 = dma.vmem_to_hbm [thread:$0]  %s263, 128, %s265, %s250
        $region48: #{tpu_custom_call.1} parent=31 // pred_fallthru
          _
      $region32: #{tpu_custom_call.1} parent=5 // pred_fallthru
        _
      %p268 = scmp.le.s32.totalorder 2, %s16
      // Predicated region
      $region49: #{tpu_custom_call.1} parent=5 // pred_check
        %p269 = pneg %p268
      $region50: #{tpu_custom_call.1} parent=5 // pred_check_branch
        %271 = sbr.rel (%p269) target = $region52
      $region51: #{tpu_custom_call.1} parent=5 // pred_region
        %s272 = ssub.s32 %s16, 2
        // Predicated region
        $region53: #{tpu_custom_call.1} parent=51 // pred_check
          %p273 = pneg %p113
        $region54: #{tpu_custom_call.1} parent=51 // pred_check_branch
          %275 = sbr.rel (%p273) target = $region56
        $region55: #{tpu_custom_call.1} parent=51 // pred_region
          %s276 = sand.u32 %s98, 1
          %s277 = scalar_lea.sflag [#allocation4], %s276
          %s278 = sand.u32 %s98, 1
          %s279 = smul.addr %s278, 8
          %s280 = scalar_lea.vmem [#allocation8], %s279
          %282 = dma.done %s277, 128
        $region56: #{tpu_custom_call.1} parent=51 // pred_fallthru
          _
      $region52: #{tpu_custom_call.1} parent=5 // pred_fallthru
        _
    $region6: #{tpu_custom_call.1} parent=1 // loop_footer
      %s20 = sadd.s32 1, %s16
    $region7: #{tpu_custom_call.1} parent=1 // loop_footer_branch
      %15 = sbr.rel target = $region3
    $region8: #{tpu_custom_call.1} parent=1 // loop_exit
      _
    %283 = vsyncpa [#allocation3], 1
    %s284 = scalar_lea.sflag [#allocation3], 1
    %285 = vsyncpa %s284, 1
    %286 = vsyncpa [#allocation6], 1
    %287 = vsyncpa [#allocation4], 1
    %s288 = scalar_lea.sflag [#allocation4], 1
    %289 = vsyncpa %s288, 1

</llo_original>
